<compile_context>
chip_gen: v6e
topology: v6e:2x2x1
jax: 0.10.0
libtpu: 0.0.40
codegen_flags: <defaults>
</compile_context>

<pallas_src>
import math

import jax
import jax.numpy as jnp
from jax.experimental import pallas as pl
from jax.experimental.pallas import tpu as pltpu


def _round_up(x, m):
    return ((x + m - 1) // m) * m


def _sigmoid_1eup(g):
    # sigmoid(g) == 0.5 * tanh(0.5 * g) + 0.5  -> a single EUP transcendental
    # instead of exp + reciprocal.
    return 0.5 * jnp.tanh(0.5 * g) + 0.5


def conv1d_glu_fused_kernel(x_ref, w_ref, b_ref, o_ref):
    """Row tile of conv-as-GEMM + bias + GLU with fused value|gate weights.

    x : (TM, KC_p)      bf16 im2col patch rows
    w : (KC_p, 2*CH_p)  bf16 [W_value | W_gate]   (resident across grid)
    b : (1, 2*CH_p)     f32  [b_value | b_gate]
    o : (TM, CH_p)      a * sigmoid(g)

    Used when CH_p == 128: one N=256 matmul fills the 256-wide MXU on v6e/v7x;
    the split at CH_p is 128-lane aligned and therefore free.
    """
    ch = o_ref.shape[-1]
    y = jnp.dot(x_ref[...], w_ref[...], preferred_element_type=jnp.float32) + b_ref[...]
    a = y[:, :ch]
    g = y[:, ch:]
    o_ref[...] = (a * _sigmoid_1eup(g)).astype(o_ref.dtype)


def conv1d_glu_split_kernel(x_ref, wa_ref, wg_ref, ba_ref, bg_ref, o_ref):
    """Same math, two narrow matmuls (used when CH_p >= 256)."""
    x = x_ref[...]
    a = jnp.dot(x, wa_ref[...], preferred_element_type=jnp.float32) + ba_ref[...]
    g = jnp.dot(x, wg_ref[...], preferred_element_type=jnp.float32) + bg_ref[...]
    o_ref[...] = (a * _sigmoid_1eup(g)).astype(o_ref.dtype)


def _vmem_capacity_bytes():
    try:
        cap = getattr(pltpu.get_tpu_info(), "vmem_capacity_bytes", None)
        if cap:
            return int(cap)
    except Exception:
        pass
    return 64 * 1024 * 1024  # conservative default: v7x per-core VMEM


def conv1d_glu_layer(x_blc, weight, bias, stride, *, tm=512, out_dtype=jnp.bfloat16):
    """One Conv1d (+bias) + GLU(dim=channel) layer, channels-last.

    x_blc : (B, L, C_pad) — channels beyond the weight's C_in are zero padding
            carried over from the previous layer (or C_pad == C_in).
    weight: (C_out, C_in, K)  -- PyTorch Conv1d weight layout
    bias  : (C_out,)
    Returns (B, L_out, CH_p) in `out_dtype`; only the first C_out//2 channels are
    meaningful, the rest are exact zeros.
    """
    B, L, C_pad = x_blc.shape
    C_out, C_in, K = weight.shape
    assert C_in <= C_pad, (C_in, C_pad)
    pad = K // 2
    L_out = (L + 2 * pad - K) // stride + 1
    C_half = C_out // 2
    CH_p = _round_up(C_half, 128)

    # --- XLA glue: bf16 cast FIRST, then pad + strided-slice im2col ---------
    # TODO(synk): v5e layer-0 is compute-bound with mostly-zero padded KC; the
    # in-kernel per-tap formulation (see module TODO) would avoid that waste.
    x_b = x_blc.astype(jnp.bfloat16)
    x_p = jnp.pad(x_b, ((0, 0), (pad, pad), (0, 0)))
    end = stride * (L_out - 1) + 1
    taps = [x_p[:, k:k + end:stride, :] for k in range(K)]   # K plain strided copies
    patches = jnp.stack(taps, axis=2)                        # (B, L_out, K, C_pad)
    KC = K * C_pad
    x_col = patches.reshape(B * L_out, KC)

    # --- pad to MXU / vreg friendly multiples --------------------------------
    M = B * L_out
    KC_p = _round_up(KC, 128)      # contraction dim -> full lanes (zero-padded taps)
    M_p = _round_up(M, 16)         # bf16 sublane multiple
    # Row tile: aim for >= 2 grid tiles so v7x megacore gets work on both cores.
    TM = min(tm, max(16, _round_up((M_p + 1) // 2, 16)))

    out_itemsize = jnp.dtype(out_dtype).itemsize

    def vmem_estimate(tm_):
        return (2 * tm_ * KC_p * 2               # x tiles   (bf16, double-buffered)
                + 2 * tm_ * CH_p * out_itemsize  # out tiles (double-buffered)
                + KC_p * (2 * CH_p) * 2          # resident weights (bf16)
                + 8 * (2 * CH_p) * 4)            # biases (sublane-padded, f32)

    vmem_cap = _vmem_capacity_bytes()
    vmem_budget = vmem_cap * 3 // 4              # leave headroom for internal scratch
    while TM > 16 and vmem_estimate(TM) > vmem_budget:
        TM = max(16, _round_up(TM // 2, 16))
    M_pad = _round_up(M_p, TM)                   # no ragged / masked stores

    x_col_p = jnp.pad(x_col, ((0, M_pad - M), (0, KC_p - KC)))

    # (C_out, C_in, K) -> zero-pad input channels to C_pad -> (K*C_pad, C_out),
    # split into GLU value/gate halves, pad output lanes, cast bf16.
    w = weight
    if C_in < C_pad:
        w = jnp.pad(w, ((0, 0), (0, C_pad - C_in), (0, 0)))
    w_mat = jnp.transpose(w, (2, 1, 0)).reshape(KC, C_out)
    wa = jnp.pad(w_mat[:, :C_half], ((0, KC_p - KC), (0, CH_p - C_half))).astype(jnp.bfloat16)
    wg = jnp.pad(w_mat[:, C_half:], ((0, KC_p - KC), (0, CH_p - C_half))).astype(jnp.bfloat16)
    ba = jnp.pad(bias[:C_half].reshape(1, C_half).astype(jnp.float32),
                 ((0, 0), (0, CH_p - C_half)))
    bg = jnp.pad(bias[C_half:].reshape(1, C_half).astype(jnp.float32),
                 ((0, 0), (0, CH_p - C_half)))

    grid = (M_pad // TM,)
    vmem_limit = int(min(max(2 * vmem_estimate(TM), 16 * 1024 * 1024), vmem_budget))
    compiler_params = pltpu.CompilerParams(
        dimension_semantics=("parallel",),   # v7x megacore sharding; no-op on v5e/v6e
        vmem_limit_bytes=vmem_limit,
    )

    if CH_p == 128:
        # Fused weights: one wide matmul uses the full 256-lane MXU (v6e/v7x).
        wf = jnp.concatenate([wa, wg], axis=1)   # (KC_p, 256)
        bf = jnp.concatenate([ba, bg], axis=1)   # (1, 256)
        out = pl.pallas_call(
            conv1d_glu_fused_kernel,
            out_shape=jax.ShapeDtypeStruct((M_pad, CH_p), out_dtype),
            grid=grid,
            in_specs=[
                pl.BlockSpec((TM, KC_p), lambda i: (i, 0)),        # x rows: tiled
                pl.BlockSpec((KC_p, 2 * CH_p), lambda i: (0, 0)),  # weights: resident
                pl.BlockSpec((1, 2 * CH_p), lambda i: (0, 0)),     # bias
            ],
            out_specs=pl.BlockSpec((TM, CH_p), lambda i: (i, 0)),
            compiler_params=compiler_params,
        )(x_col_p, wf, bf)
    else:
        # TODO(synk): add an output-channel grid axis (weight BlockSpec (0, j))
        # when resident weights exceed ~1/3 of VMEM instead of only shrinking TM.
        out = pl.pallas_call(
            conv1d_glu_split_kernel,
            out_shape=jax.ShapeDtypeStruct((M_pad, CH_p), out_dtype),
            grid=grid,
            in_specs=[
                pl.BlockSpec((TM, KC_p), lambda i: (i, 0)),    # x rows: tiled
                pl.BlockSpec((KC_p, CH_p), lambda i: (0, 0)),  # wa: resident
                pl.BlockSpec((KC_p, CH_p), lambda i: (0, 0)),  # wg: resident
                pl.BlockSpec((1, CH_p), lambda i: (0, 0)),     # ba
                pl.BlockSpec((1, CH_p), lambda i: (0, 0)),     # bg
            ],
            out_specs=pl.BlockSpec((TM, CH_p), lambda i: (i, 0)),
            compiler_params=compiler_params,
        )(x_col_p, wa, wg, ba, bg)

    # Padded output channels are exact zeros (zero weight cols + zero bias), so
    # they can be carried into the next layer; only the valid rows are kept.
    return out[:M].reshape(B, L_out, CH_p)


class Conv1dModulePallas:
    """Mirrors Conv1dModule(__init__) for data_processor='s2t' (use_glu=True),
    norm_mode=None, conv_bias=True, padding=True, stride=2 per layer."""

    def __init__(self, key, audio_feature_size, conv_channels, kernel_sizes):
        strides = [2 for _ in range(len(kernel_sizes))]
        assert len(strides) == len(conv_channels), "strides and conv_channels are not matched"
        in_channel = conv_channels[0] // 2
        self.params = []
        prev_half = None
        for i, (k, s, c) in enumerate(zip(kernel_sizes, strides, conv_channels)):
            if audio_feature_size == 1:
                in_channel = c
            cin = audio_feature_size if i == 0 else in_channel
            if i > 0:
                # Original module's channel bookkeeping only works when this holds
                # (GLU halves the previous layer's channels) — assert instead of
                # silently building mismatched weights.
                assert cin == prev_half, (
                    f"layer {i}: in_channels {cin} != previous GLU output {prev_half}")
            key, wk, bk = jax.random.split(key, 3)
            fan_in = cin * k
            # nn.init.kaiming_normal_ (fan_in mode, gain=sqrt(2))
            w = math.sqrt(2.0 / fan_in) * jax.random.normal(wk, (c, cin, k), jnp.float32)
            # default Conv1d bias init: U(-1/sqrt(fan_in), 1/sqrt(fan_in))
            bound = 1.0 / math.sqrt(fan_in)
            b = jax.random.uniform(bk, (c,), jnp.float32, -bound, bound)
            self.params.append((w, b, s))
            prev_half = c // 2

    def __call__(self, x):
        # x: (B, T, audio_feature_size) or (B, T) when audio_feature_size == 1
        h = x[:, :, None] if x.ndim == 2 else x    # channels-last
        valid_c = h.shape[-1]
        n = len(self.params)
        for i, (w, b, s) in enumerate(self.params):
            c_in = w.shape[1]
            if h.shape[-1] != c_in:
                # Channels beyond c_in are exact-zero padding from the previous layer.
                # Keep them (the layer zero-pads the weight's input-channel rows to
                # absorb them) unless that would noticeably inflate the contraction.
                if (h.shape[-1] - c_in) * 8 > c_in:
                    h = h[..., :c_in]
            out_dtype = jnp.float32 if i == n - 1 else jnp.bfloat16
            h = conv1d_glu_layer(h, w, b, s, out_dtype=out_dtype)   # conv + bias + GLU
            valid_c = w.shape[0] // 2
        return h[..., :valid_c]   # single channel slice at the very end


def reference_forward(x, params):
    """Pure-JAX f32 reference (lax.conv) reproducing PyTorch semantics."""
    h = x if x.ndim == 3 else x[:, :, None]
    h = jnp.transpose(h, (0, 2, 1))  # (B, C, T)
    for (w, b, s) in params:
        k = w.shape[-1]
        h = jax.lax.conv_general_dilated(
            h, w, window_strides=(s,), padding=[(k // 2, k // 2)],
            dimension_numbers=("NCH", "OIH", "NCH"))
        h = h + b[None, :, None]
        c = h.shape[1]
        h = h[:, : c // 2] * jax.nn.sigmoid(h[:, c // 2:])
    return jnp.transpose(h, (0, 2, 1))


if __name__ == "__main__":
    key = jax.random.PRNGKey(0)

    def check(module, x, expect_shape, rel_tol=2e-2):
        out = jax.block_until_ready(module(x))
        assert out.shape == expect_shape, out.shape
        ref = reference_forward(x, module.params)
        err = float(jnp.max(jnp.abs(out.astype(jnp.float32) - ref)))
        scale = float(jnp.max(jnp.abs(ref))) + 1e-6
        if err / scale > rel_tol:
            raise AssertionError(
                f"Pallas/reference mismatch: abs={err} rel={err / scale}")

    # Case 1: tiny channels (C_half=8 -> CH_p=128): fused (KC_p x 256) matmul path.
    B, T, F = 2, 16, 8
    conv_channels, kernel_sizes = [16, 16], [3, 3]
    key, xk, mk = jax.random.split(key, 3)
    x = jax.random.normal(xk, (B, T, F), jnp.float32)
    module = Conv1dModulePallas(mk, F, conv_channels, kernel_sizes)
    # T: 16 -> 8 -> 4 with stride 2 and k//2 padding
    check(module, x, (B, 4, conv_channels[-1] // 2))

    # Case 2: wide channels (C_half=256 -> CH_p=256): split two-matmul path.
    B2, T2, F2 = 1, 8, 4
    conv_channels2, kernel_sizes2 = [512, 512], [3, 3]
    key, xk2, mk2 = jax.random.split(key, 3)
    x2 = jax.random.normal(xk2, (B2, T2, F2), jnp.float32)
    module2 = Conv1dModulePallas(mk2, F2, conv_channels2, kernel_sizes2)
    check(module2, x2, (B2, 2, conv_channels2[-1] // 2))

    print("KERNEL_OK")
</pallas_src>

<mosaic_0001>
module attributes {stable_mosaic.version = 11 : i64} {
  func.func @conv1d_glu_fused_kernel(%arg0: i32, %arg1: memref<16x128xbf16, #tpu.memory_space<vmem>>, %arg2: memref<128x256xbf16, #tpu.memory_space<vmem>>, %arg3: memref<1x256xf32, #tpu.memory_space<vmem>>, %arg4: memref<16x128xbf16, #tpu.memory_space<vmem>>) attributes {dimension_semantics = [#tpu.dimension_semantics<parallel>], iteration_bounds = array<i64: 1>, scalar_prefetch = 0 : i64, scratch_operands = 0 : i64, tpu.core_type = #tpu.core_type<tc>, window_params = [{transform_indices = @transform_0, window_bounds = array<i64: 16, 128>}, {pipeline_mode = #tpu.pipeline_mode<synchronous>, transform_indices = @transform_1, window_bounds = array<i64: 128, 256>}, {pipeline_mode = #tpu.pipeline_mode<synchronous>, transform_indices = @transform_2, window_bounds = array<i64: 1, 256>}, {transform_indices = @transform_3, window_bounds = array<i64: 16, 128>}]} {
    %c0 = arith.constant 0 : index
    %c0_0 = arith.constant 0 : index
    %0 = vector.load %arg1[%c0, %c0_0] : memref<16x128xbf16, #tpu.memory_space<vmem>>, vector<16x128xbf16>
    %c0_1 = arith.constant 0 : index
    %c0_2 = arith.constant 0 : index
    %1 = vector.load %arg2[%c0_1, %c0_2] : memref<128x256xbf16, #tpu.memory_space<vmem>>, vector<128x256xbf16>
    %cst = arith.constant dense<0.000000e+00> : vector<16x256xf32>
    %2 = tpu.matmul %0, %1, %cst {dimension_numbers = #tpu.dot_dimension_numbers<[1], [0], [0], [1], [0, 0, 1, 1], [], []>} : vector<16x128xbf16>, vector<128x256xbf16>, vector<16x256xf32> -> vector<16x256xf32>
    %c0_3 = arith.constant 0 : index
    %c0_4 = arith.constant 0 : index
    %3 = vector.load %arg3[%c0_3, %c0_4] : memref<1x256xf32, #tpu.memory_space<vmem>>, vector<1x256xf32>
    %4 = vector.broadcast %3 : vector<1x256xf32> to vector<16x256xf32>
    %5 = arith.addf %2, %4 : vector<16x256xf32>
    %6 = vector.extract_strided_slice %5 {offsets = [0, 0], sizes = [16, 128], strides = [1, 1]} : vector<16x256xf32> to vector<16x128xf32>
    %7 = vector.extract_strided_slice %5 {offsets = [0, 128], sizes = [16, 128], strides = [1, 1]} : vector<16x256xf32> to vector<16x128xf32>
    %cst_5 = arith.constant 5.000000e-01 : f32
    %8 = vector.broadcast %cst_5 : f32 to vector<16x128xf32>
    %9 = arith.mulf %8, %7 : vector<16x128xf32>
    %10 = math.tanh %9 : vector<16x128xf32>
    %cst_6 = arith.constant 5.000000e-01 : f32
    %11 = vector.broadcast %cst_6 : f32 to vector<16x128xf32>
    %12 = arith.mulf %11, %10 : vector<16x128xf32>
    %cst_7 = arith.constant 5.000000e-01 : f32
    %13 = vector.broadcast %cst_7 : f32 to vector<16x128xf32>
    %14 = arith.addf %12, %13 : vector<16x128xf32>
    %15 = arith.mulf %6, %14 : vector<16x128xf32>
    %16 = arith.truncf %15 : vector<16x128xf32> to vector<16x128xbf16>
    %c0_8 = arith.constant 0 : index
    %c0_9 = arith.constant 0 : index
    %17 = vector.load %arg4[%c0_8, %c0_9] : memref<16x128xbf16, #tpu.memory_space<vmem>>, vector<16x128xbf16>
    tpu.vector_store %arg4[%c0_8, %c0_9], %16 {strides = array<i32>} : memref<16x128xbf16, #tpu.memory_space<vmem>>, vector<16x128xbf16>,
    return
  }
  func.func @transform_0(%arg0: i32) -> (i32, i32) {
    %c0_i32 = arith.constant 0 : i32
    %c0_i32_0 = arith.constant 0 : i32
    return %arg0, %c0_i32 : i32, i32
  }
  func.func @transform_1(%arg0: i32) -> (i32, i32) {
    %c0_i32 = arith.constant 0 : i32
    %c0_i32_0 = arith.constant 0 : i32
    %c0_i32_1 = arith.constant 0 : i32
    return %c0_i32, %c0_i32_0 : i32, i32
  }
  func.func @transform_2(%arg0: i32) -> (i32, i32) {
    %c0_i32 = arith.constant 0 : i32
    %c0_i32_0 = arith.constant 0 : i32
    %c0_i32_1 = arith.constant 0 : i32
    return %c0_i32, %c0_i32_0 : i32, i32
  }
  func.func @transform_3(%arg0: i32) -> (i32, i32) {
    %c0_i32 = arith.constant 0 : i32
    %c0_i32_0 = arith.constant 0 : i32
    return %arg0, %c0_i32 : i32, i32
  }
}

</mosaic_0001>

<llo_original>
// kernel: tpu_custom_call.1
$region0: #{tpu_custom_call.1}
  #allocation0 [shape = 'u32[]', space=smem, size = 0x4, offset = 0x4, fixed_abs, tag = 'smem constant byte address 0x4 - core index']
  #allocation1 [shape = 'u32[144,128]{1,0:T(1,128)}', space=vmem, size = 0x12000, scoped, tag = 'internal scratch']
  %s0 = inlined_call_operand.hbm [shape: bf16[16,128], index: 0, kind: input, shape index: {}]
  %s1 = inlined_call_operand.hbm [shape: bf16[128,256], index: 1, kind: input, shape index: {}]
  %s2 = inlined_call_operand.vmem [shape: f32[1,256], index: 2, kind: input, shape index: {}]
  %s3 = inlined_call_operand.hbm [shape: bf16[16,128], index: 3, kind: output, shape index: {}]
  %s4 = sld [smem:[#allocation0]]
  $region30: #{tpu_custom_call.1} parent=0
    _
  %s6 = ssub.s32 1, %s4
  %s7 = scalar_select 0, %s6, %s4
  $region1: #{tpu_custom_call.1} parent=0
    #allocation2 [shape = 'u8[4096]{0}', space=vmem, size = 0x1000, scoped, tag = 'input window, operand 0, single buffered']
    #allocation3 [shape = 's32[1]{0}', space=sflag, size = 0x4, scoped, tag = 'scoped memory for tpu_custom_call.1']
    #allocation4 [shape = 's32[1]{0}', space=sflag, size = 0x4, scoped, tag = 'scoped memory for tpu_custom_call.1']
    #allocation5 [shape = 'u8[65536]{0}', space=vmem, size = 0x10000, scoped, tag = 'input window, operand 1, single buffered']
    #allocation6 [shape = 's32[1]{0}', space=sflag, size = 0x4, scoped, tag = 'scoped memory for tpu_custom_call.1']
    #allocation7 [shape = 'u8[4096]{0}', space=vmem, size = 0x1000, scoped, tag = 'output window, operand 0, single buffered']
    %8 = vsyncpa [#allocation3], 0
    %9 = vsyncpa [#allocation6], 0
    %10 = vsyncpa [#allocation4], 0
    // Predicated region
    $region2: #{tpu_custom_call.1} parent=1 // pred_check
      _
    $region3: #{tpu_custom_call.1} parent=1 // pred_check_branch
      %12 = sbr.rel (0) target = $region5
    $region4: #{tpu_custom_call.1} parent=1 // pred_region
      %s14 = ssub.s32 128, 128
      %15 = vsyncadd [#allocation3], %s14
      %s16 = sshll.u32 [#allocation2], 4
      %s17 = int_to_ptr.vmem [resolvable:$true] %s16
      %22 = dma.hbm_to_vmem [thread:$0]  %s0, 128, %s17, [#allocation3], 64, 64, 4
    $region5: #{tpu_custom_call.1} parent=1 // pred_fallthru
      _
    // Predicated region
    $region6: #{tpu_custom_call.1} parent=1 // pred_check
      _
    $region7: #{tpu_custom_call.1} parent=1 // pred_check_branch
      %24 = sbr.rel (0) target = $region9
    $region8: #{tpu_custom_call.1} parent=1 // pred_region
      %s26 = ssub.s32 2048, 2048
      %27 = vsyncadd [#allocation6], %s26
      %s28 = sshll.u32 [#allocation5], 4
      %s29 = int_to_ptr.vmem [resolvable:$true] %s28
      %34 = dma.hbm_to_vmem [thread:$0]  %s1, 2048, %s29, [#allocation6], 128, 128, 8
    $region9: #{tpu_custom_call.1} parent=1 // pred_fallthru
      _
    // Predicated region
    $region10: #{tpu_custom_call.1} parent=1 // pred_check
      _
    $region11: #{tpu_custom_call.1} parent=1 // pred_check_branch
      %36 = sbr.rel (0) target = $region13
    $region12: #{tpu_custom_call.1} parent=1 // pred_region
      _
    $region13: #{tpu_custom_call.1} parent=1 // pred_fallthru
      _
    // Predicated region
    $region14: #{tpu_custom_call.1} parent=1 // pred_check
      _
    $region15: #{tpu_custom_call.1} parent=1 // pred_check_branch
      %38 = sbr.rel (0) target = $region17
    $region16: #{tpu_custom_call.1} parent=1 // pred_region
      %39 = dma.done [#allocation3], 128
    $region17: #{tpu_custom_call.1} parent=1 // pred_fallthru
      _
    // Predicated region
    $region18: #{tpu_custom_call.1} parent=1 // pred_check
      _
    $region19: #{tpu_custom_call.1} parent=1 // pred_check_branch
      %41 = sbr.rel (0) target = $region21
    $region20: #{tpu_custom_call.1} parent=1 // pred_region
      %42 = dma.done [#allocation6], 2048
    $region21: #{tpu_custom_call.1} parent=1 // pred_fallthru
      _
    %v44 = vld [vmem:[#allocation2] sm:$0xf]
    %v45 = vld [vmem:[#allocation2 + $0x4] sm:$0xf]
    %v46 = vld [vmem:[#allocation5] sm:$0xff]
    %v47 = vld [vmem:[#allocation5 + $0x8] sm:$0xff]
    %v48 = vld [vmem:[#allocation5 + $0x10] sm:$0xff]
    %v49 = vld [vmem:[#allocation5 + $0x18] sm:$0xff]
    %v50 = vld [vmem:[#allocation5 + $0x20] sm:$0xff]
    %v51 = vld [vmem:[#allocation5 + $0x28] sm:$0xff]
    %v52 = vld [vmem:[#allocation5 + $0x30] sm:$0xff]
    %v53 = vld [vmem:[#allocation5 + $0x38] sm:$0xff]
    %v54 = vld [vmem:[#allocation5 + $0x40] sm:$0xff]
    %v55 = vld [vmem:[#allocation5 + $0x48] sm:$0xff]
    %v56 = vld [vmem:[#allocation5 + $0x50] sm:$0xff]
    %v57 = vld [vmem:[#allocation5 + $0x58] sm:$0xff]
    %v58 = vld [vmem:[#allocation5 + $0x60] sm:$0xff]
    %v59 = vld [vmem:[#allocation5 + $0x68] sm:$0xff]
    %v60 = vld [vmem:[#allocation5 + $0x70] sm:$0xff]
    %v61 = vld [vmem:[#allocation5 + $0x78] sm:$0xff]
    %v62 = vld [vmem:[%s2] sm:$0x3]
    %v64 = vlaneseq
    %v65 = vshrl.u32 %v64, 7
    %v66 = vsub.s32 0, %v65
    %v67 = vrot.slane %v62, %v66
    %v68 = vlaneseq
    %v69 = vshrl.u32 %v68, 7
    %v70 = vsub.s32 1, %v69
    %v71 = vrot.slane %v62, %v70
    %v76 = vunpack.c.l.b16 %v44
    %v77 = vunpack.c.l.b16 %v45
    %v78 = vpack.c.b16 %v77, %v76
    %v96 = vunpack.c.l.b16 %v46
    %v97 = vunpack.c.h.b16 %v46
    %v98 = vunpack.c.l.b16 %v47
    %v99 = vunpack.c.h.b16 %v47
    %v100 = vunpack.c.l.b16 %v48
    %v101 = vunpack.c.h.b16 %v48
    %v102 = vunpack.c.l.b16 %v49
    %v103 = vunpack.c.h.b16 %v49
    %v104 = vunpack.c.l.b16 %v50
    %v105 = vunpack.c.h.b16 %v50
    %v106 = vunpack.c.l.b16 %v51
    %v107 = vunpack.c.h.b16 %v51
    %v108 = vunpack.c.l.b16 %v52
    %v109 = vunpack.c.h.b16 %v52
    %v110 = vunpack.c.l.b16 %v53
    %v111 = vunpack.c.h.b16 %v53
    %v112 = vunpack.c.l.b16 %v54
    %v113 = vunpack.c.h.b16 %v54
    %v114 = vunpack.c.l.b16 %v55
    %v115 = vunpack.c.h.b16 %v55
    %v116 = vunpack.c.l.b16 %v56
    %v117 = vunpack.c.h.b16 %v56
    %v118 = vunpack.c.l.b16 %v57
    %v119 = vunpack.c.h.b16 %v57
    %v120 = vunpack.c.l.b16 %v58
    %v121 = vunpack.c.h.b16 %v58
    %v122 = vunpack.c.l.b16 %v59
    %v123 = vunpack.c.h.b16 %v59
    %v124 = vunpack.c.l.b16 %v60
    %v125 = vunpack.c.h.b16 %v60
    %v126 = vunpack.c.l.b16 %v61
    %v127 = vunpack.c.h.b16 %v61
    %v128 = vpack.c.b16 %v98, %v96
    %v129 = vpack.c.b16 %v99, %v97
    %v130 = vpack.c.b16 %v102, %v100
    %v131 = vpack.c.b16 %v103, %v101
    %v132 = vpack.c.b16 %v106, %v104
    %v133 = vpack.c.b16 %v107, %v105
    %v134 = vpack.c.b16 %v110, %v108
    %v135 = vpack.c.b16 %v111, %v109
    %v136 = vpack.c.b16 %v114, %v112
    %v137 = vpack.c.b16 %v115, %v113
    %v138 = vpack.c.b16 %v118, %v116
    %v139 = vpack.c.b16 %v119, %v117
    %v140 = vpack.c.b16 %v122, %v120
    %v141 = vpack.c.b16 %v123, %v121
    %v142 = vpack.c.b16 %v126, %v124
    %v143 = vpack.c.b16 %v127, %v125
    %160 = vmatprep.subr.bf16.mxu0 %v143
    %161 = vmatpush1.bf16.msra.mxu0 %v142
    %162 = vmatprep.subr.bf16.mxu0 %v141
    %163 = vmatpush1.bf16.msra.mxu0 %v140
    %164 = vmatprep.subr.bf16.mxu0 %v139
    %165 = vmatpush1.bf16.msra.mxu0 %v138
    %166 = vmatprep.subr.bf16.mxu0 %v137
    %167 = vmatpush1.bf16.msra.mxu0 %v136
    %168 = vmatprep.subr.bf16.mxu0 %v135
    %169 = vmatpush1.bf16.msra.mxu0 %v134
    %170 = vmatprep.subr.bf16.mxu0 %v133
    %171 = vmatpush1.bf16.msra.mxu0 %v132
    %172 = vmatprep.subr.bf16.mxu0 %v131
    %173 = vmatpush1.bf16.msra.mxu0 %v130
    %174 = vmatprep.subr.bf16.mxu0 %v129
    %175 = vmatpush1.bf16.msra.mxu0 %v128
    %176 = vmatprep.subr.bf16.mxu0 0
    %177 = vmatpush2.bf16.msra.mxu0 0
    %178 = vmatprep.subr.bf16.mxu0 0
    %179 = vmatpush2.bf16.msra.mxu0 0
    %180 = vmatprep.subr.bf16.mxu0 0
    %181 = vmatpush2.bf16.msra.mxu0 0
    %182 = vmatprep.subr.bf16.mxu0 0
    %183 = vmatpush2.bf16.msra.mxu0 0
    %184 = vmatprep.subr.bf16.mxu0 0
    %185 = vmatpush2.bf16.msra.mxu0 0
    %186 = vmatprep.subr.bf16.mxu0 0
    %187 = vmatpush2.bf16.msra.mxu0 0
    %188 = vmatprep.subr.bf16.mxu0 0
    %189 = vmatpush2.bf16.msra.mxu0 0
    %190 = vmatprep.subr.bf16.mxu0 0
    %191 = vmatpush2.bf16.msra.mxu0 0
    %192 = vmatprep.mubr.bf16.mxu0 0
    %193 = vmatmul.mubr.bf16.gmra.mxu0 %v78
    %v194 = vpop.f32.mrf.mxu0
    %v195 = vadd.f32 %v67, %v194
    %v196 = vpop.f32.mrf.mxu0
    %v197 = vadd.f32 %v71, %v196
    %v198 = vpop.f32.mrf.mxu0
    %v199 = vadd.f32 %v67, %v198
    %v200 = vpop.f32.mrf.mxu0
    %v201 = vadd.f32 %v71, %v200
    %202 = vdwg.mxu0
    %v203 = vmul.f32 %v197, 0.5
    %v204 = vmul.f32 %v201, 0.5
    %v205 = vtanh.pop %v203
    %v206 = vtanh.pop %v204
    %v207 = vmul.f32 %v205, 0.5
    %v208 = vmul.f32 %v206, 0.5
    %v209 = vadd.f32 %v207, 0.5
    %v210 = vadd.f32 %v208, 0.5
    %v211 = vmul.f32 %v195, %v209
    %v212 = vmul.f32 %v199, %v210
    %v213 = vpack.c.bf16 %v212, %v211
    %v215 = vunpack.c.l.b16 %v213
    %v216 = vunpack.c.h.b16 %v213
    %v217 = vpack.c.b16 %v215, %v215
    %v218 = vpack.c.b16 %v216, %v216
    %221 = vst [vmem:[#allocation7] sm:$0xf] %v217
    %222 = vst [vmem:[#allocation7 + $0x4] sm:$0xf] %v218
    // Predicated region
    $region22: #{tpu_custom_call.1} parent=1 // pred_check
      _
    $region23: #{tpu_custom_call.1} parent=1 // pred_check_branch
      %224 = sbr.rel (0) target = $region25
    $region24: #{tpu_custom_call.1} parent=1 // pred_region
      %s226 = ssub.s32 128, 128
      %227 = vsyncadd [#allocation4], %s226
      %s228 = sshll.u32 [#allocation7], 4
      %s229 = int_to_ptr.vmem [resolvable:$true] %s228
      %234 = dma.vmem_to_hbm [thread:$0]  %s229, 128, %s3, [#allocation4], 64, 64, 4
    $region25: #{tpu_custom_call.1} parent=1 // pred_fallthru
      _
    // Predicated region
    $region26: #{tpu_custom_call.1} parent=1 // pred_check
      _
    $region27: #{tpu_custom_call.1} parent=1 // pred_check_branch
      %236 = sbr.rel (0) target = $region29
    $region28: #{tpu_custom_call.1} parent=1 // pred_region
      %237 = dma.done [#allocation4], 128
    $region29: #{tpu_custom_call.1} parent=1 // pred_fallthru
      _
    %238 = vsyncpa [#allocation3], 1
    %239 = vsyncpa [#allocation6], 1
    %240 = vsyncpa [#allocation4], 1

</llo_original>
